<compile_context>
chip_gen: v7x
topology: tpu7x:2x2x1
jax: 0.10.0
libtpu: 0.0.40
codegen_flags: <defaults>
</compile_context>

<pallas_src>
from functools import partial

import jax
import jax.numpy as jnp
from jax import lax
from jax.experimental import pallas as pl
from jax.experimental.pallas import tpu as pltpu


def _resblock_kernel(x_ref, w1_ref, b1_ref, w2_ref, b2_ref, out_ref, *, hp):
    # x_ref   : (M, L) f32   M = images_per_step * H/2 folded row-pairs, L = 2*W*C
    # w*_ref  : (3, L, L) bf16  pair-banded weights (prev / same / next super-row)
    # b*_ref  : (1, L) f32
    # out_ref : (M, L)
    m, lanes = x_ref.shape
    assert m % hp == 0                       # trace-time sanity (hp rows per image)
    row = lax.broadcasted_iota(jnp.int32, (m, lanes), 0) % hp
    top = row == 0                           # first folded row of each image
    bot = row == hp - 1                      # last folded row of each image

    def conv3x3(xf, w_ref, acc):
        # Shifted super-row views built in registers: roll (XLU) + mask (VPU).
        # The mask also zeroes rows that would otherwise leak across image
        # boundaries when several images are folded into M.
        x_up = jnp.where(top, 0.0, pltpu.roll(xf, shift=1, axis=0))       # row r-1
        x_dn = jnp.where(bot, 0.0, pltpu.roll(xf, shift=m - 1, axis=0))   # row r+1
        acc = acc + jnp.dot(x_up.astype(jnp.bfloat16), w_ref[0],
                            preferred_element_type=jnp.float32)
        acc = acc + jnp.dot(xf.astype(jnp.bfloat16), w_ref[1],
                            preferred_element_type=jnp.float32)
        acc = acc + jnp.dot(x_dn.astype(jnp.bfloat16), w_ref[2],
                            preferred_element_type=jnp.float32)
        return acc

    x = x_ref[...].astype(jnp.float32)
    b1 = jnp.broadcast_to(b1_ref[...], (m, lanes)).astype(jnp.float32)
    b2 = jnp.broadcast_to(b2_ref[...], (m, lanes)).astype(jnp.float32)

    h = jnp.maximum(conv3x3(x, w1_ref, b1), 0.0)       # conv1 + bias + ReLU
    y = conv3x3(h, w2_ref, x + b2)                     # conv2; bias + residual in init
    out_ref[...] = y.astype(out_ref.dtype)


def _pair_banded_weights(w_hwio, W):
    """Fold a 3x3 HWIO kernel (SAME padding) into three (2*W*C, 2*W*C) matrices
    acting on row-pair "super-rows":
      out_super[r] = super[r-1] @ Wp[0] + super[r] @ Wp[1] + super[r+1] @ Wp[2]
    with zero super-rows outside the image."""
    kh, kw, ci, co = w_hwio.shape
    # Per-kernel-row banded (W*ci, W*co) matrices: out_row[h] = sum_kh row[h+kh-1] @ Wb[kh].
    shift = jnp.stack([jnp.eye(W, k=1 - k, dtype=w_hwio.dtype) for k in range(kw)])
    wb = jnp.einsum('kuw,hkio->huiwo', shift, w_hwio).reshape(kh, W * ci, W * co)
    W0, W1, W2 = wb[0], wb[1], wb[2]
    Z = jnp.zeros_like(W0)
    A = jnp.block([[Z, Z], [W0, Z]])     # from super-row r-1 (only its odd row 2r-1)
    B = jnp.block([[W1, W0], [W2, W1]])  # from super-row r   (rows 2r and 2r+1)
    C = jnp.block([[Z, W2], [Z, Z]])     # from super-row r+1 (only its even row 2r+2)
    return jnp.stack([A, B, C])          # (3, 2*W*ci, 2*W*co)


def _images_per_step(n):
    """Whole batch in one grid step on single-TC chips (v5e/v6e); one image per
    step on 2-TC chips (v7x) so the 'parallel' batch axis feeds both cores."""
    try:
        kind = jax.devices()[0].device_kind.lower()
    except Exception:
        kind = ""
    two_tensorcores = "7" in kind        # e.g. "TPU7x" / "TPU v7x"
    if two_tensorcores and n % 2 == 0:
        return n // 2
    return n


def residual_block_nhwc(x_nhwc, w1_hwio, b1, w2_hwio, b2):
    """x_nhwc: (N, H, W, C) f32; weights HWIO (3,3,C,C); biases (C,)."""
    N, H, W, C = x_nhwc.shape
    assert H % 2 == 0, "row-pair folding needs even H"
    L = 2 * W * C                        # lanes per folded row-pair (=128 at spec shape)
    HP = H // 2                          # folded rows per image
    nb = _images_per_step(N)             # images per grid step
    steps = N // nb
    M = nb * HP                          # matmul M per grid step

    x2d = x_nhwc.reshape(N * HP, L)      # lane-dense folded layout

    wp1 = _pair_banded_weights(w1_hwio, W).astype(jnp.bfloat16)   # (3, L, L)
    wp2 = _pair_banded_weights(w2_hwio, W).astype(jnp.bfloat16)
    b1r = jnp.tile(b1, 2 * W).reshape(1, L).astype(jnp.float32)
    b2r = jnp.tile(b2, 2 * W).reshape(1, L).astype(jnp.float32)

    cost = pl.CostEstimate(
        flops=2 * 3 * 2 * (N * HP) * L * L,          # 2 convs x 3 matmuls actually run
        transcendentals=0,
        bytes_accessed=(2 * N * HP * L * 4           # activations in + out (f32)
                        + 2 * 3 * L * L * 2          # two bf16 weight stacks
                        + 2 * L * 4))                # biases

    y2d = pl.pallas_call(
        partial(_resblock_kernel, hp=HP),
        out_shape=jax.ShapeDtypeStruct((N * HP, L), x_nhwc.dtype),
        grid=(steps,),
        in_specs=[
            pl.BlockSpec((M, L), lambda i: (i, 0)),
            pl.BlockSpec((3, L, L), lambda i: (0, 0, 0)),
            pl.BlockSpec((1, L), lambda i: (0, 0)),
            pl.BlockSpec((3, L, L), lambda i: (0, 0, 0)),
            pl.BlockSpec((1, L), lambda i: (0, 0)),
        ],
        out_specs=pl.BlockSpec((M, L), lambda i: (i, 0)),
        compiler_params=pltpu.CompilerParams(
            dimension_semantics=("parallel",)),      # batch axis (megacore on v7x)
        cost_estimate=cost,
    )(x2d, wp1, b1r, wp2, b2r)

    return y2d.reshape(N, H, W, C)


def residual_block_nchw(x_nchw, w1_hwio, b1, w2_hwio, b2):
    """PyTorch-facing wrapper: NCHW in, NCHW out."""
    x_nhwc = jnp.transpose(x_nchw, (0, 2, 3, 1))
    y_nhwc = residual_block_nhwc(x_nhwc, w1_hwio, b1, w2_hwio, b2)
    return jnp.transpose(y_nhwc, (0, 3, 1, 2))


def _reference_nhwc(x, w1, b1, w2, b2):
    dn = ('NHWC', 'HWIO', 'NHWC')
    prec = lax.Precision.HIGHEST
    h = lax.conv_general_dilated(x, w1, (1, 1), 'SAME',
                                 dimension_numbers=dn, precision=prec) + b1
    h = jnp.maximum(h, 0.0)
    h = lax.conv_general_dilated(h, w2, (1, 1), 'SAME',
                                 dimension_numbers=dn, precision=prec) + b2
    return x + h


if __name__ == "__main__":
    N, C, H, W = 2, 4, 16, 16              # x: (2, 4, 16, 16) NCHW, like PyTorch
    key = jax.random.PRNGKey(0)
    kx, kw1, kw2, kb1, kb2 = jax.random.split(key, 5)

    x_nchw = jax.random.normal(kx, (N, C, H, W), jnp.float32)
    # Synthetic parameters (HWIO), matching Conv2d(C, C, 3, padding=1) shapes.
    w1 = jax.random.normal(kw1, (3, 3, C, C), jnp.float32) * 0.1
    b1 = jax.random.normal(kb1, (C,), jnp.float32) * 0.1
    w2 = jax.random.normal(kw2, (3, 3, C, C), jnp.float32) * 0.1
    b2 = jax.random.normal(kb2, (C,), jnp.float32) * 0.1

    y = residual_block_nchw(x_nchw, w1, b1, w2, b2)
    y = jax.block_until_ready(y)

    # Cross-check against XLA convs (same NHWC/HWIO parameters).
    x_nhwc = jnp.transpose(x_nchw, (0, 2, 3, 1))
    y_ref = jnp.transpose(_reference_nhwc(x_nhwc, w1, b1, w2, b2), (0, 3, 1, 2))
    assert y.shape == x_nchw.shape and y.dtype == x_nchw.dtype
    # bf16 MXU operands (f32 accumulation) -> relaxed tolerance vs f32 reference.
    assert jnp.allclose(y, y_ref, atol=3e-2, rtol=3e-2), "mismatch vs reference"

    print("KERNEL_OK")
</pallas_src>

<mosaic_0001>
module attributes {stable_mosaic.version = 11 : i64} {
  func.func @_resblock_kernel(%arg0: i32, %arg1: memref<16x128xf32, #tpu.memory_space<vmem>>, %arg2: memref<3x128x128xbf16, #tpu.memory_space<vmem>>, %arg3: memref<1x128xf32, #tpu.memory_space<vmem>>, %arg4: memref<3x128x128xbf16, #tpu.memory_space<vmem>>, %arg5: memref<1x128xf32, #tpu.memory_space<vmem>>, %arg6: memref<16x128xf32, #tpu.memory_space<vmem>>) attributes {dimension_semantics = [#tpu.dimension_semantics<parallel>], iteration_bounds = array<i64: 1>, scalar_prefetch = 0 : i64, scratch_operands = 0 : i64, tpu.core_type = #tpu.core_type<tc>, window_params = [{transform_indices = @transform_0, window_bounds = array<i64: 16, 128>}, {pipeline_mode = #tpu.pipeline_mode<synchronous>, transform_indices = @transform_1, window_bounds = array<i64: 3, 128, 128>}, {pipeline_mode = #tpu.pipeline_mode<synchronous>, transform_indices = @transform_2, window_bounds = array<i64: 1, 128>}, {pipeline_mode = #tpu.pipeline_mode<synchronous>, transform_indices = @transform_3, window_bounds = array<i64: 3, 128, 128>}, {pipeline_mode = #tpu.pipeline_mode<synchronous>, transform_indices = @transform_4, window_bounds = array<i64: 1, 128>}, {transform_indices = @transform_5, window_bounds = array<i64: 16, 128>}]} {
    %0 = tpu.iota {dimensions = array<i32: 0>} : vector<16x128xi32>
    %c8_i32 = arith.constant 8 : i32
    %c0_i32 = arith.constant 0 : i32
    %1 = arith.cmpi eq, %c8_i32, %c0_i32 : i32
    %c1_i32 = arith.constant 1 : i32
    %2 = arith.select %1, %c1_i32, %c8_i32 : i32
    %3 = vector.broadcast %2 : i32 to vector<16x128xi32>
    %4 = arith.remsi %0, %3 : vector<16x128xi32>
    %c0_i32_0 = arith.constant 0 : i32
    %5 = vector.broadcast %c0_i32_0 : i32 to vector<16x128xi32>
    %6 = arith.cmpi ne, %4, %5 : vector<16x128xi32>
    %c0_i32_1 = arith.constant 0 : i32
    %7 = vector.broadcast %c0_i32_1 : i32 to vector<16x128xi32>
    %8 = arith.cmpi slt, %4, %7 : vector<16x128xi32>
    %c0_i32_2 = arith.constant 0 : i32
    %9 = arith.cmpi slt, %2, %c0_i32_2 : i32
    %10 = vector.broadcast %9 : i1 to vector<16x128xi1>
    %11 = vector.broadcast %10 : vector<16x128xi1> to vector<16x128xi1>
    %12 = arith.xori %8, %11 : vector<16x128xi1>
    %13 = arith.andi %12, %6 : vector<16x128xi1>
    %14 = vector.broadcast %2 : i32 to vector<16x128xi32>
    %15 = arith.addi %4, %14 : vector<16x128xi32>
    %16 = arith.select %13, %15, %4 : vector<16x128xi1>, vector<16x128xi32>
    %c0_i32_3 = arith.constant 0 : i32
    %17 = vector.broadcast %c0_i32_3 : i32 to vector<16x128xi32>
    %18 = arith.cmpi eq, %16, %17 : vector<16x128xi32>
    %c7_i32 = arith.constant 7 : i32
    %19 = vector.broadcast %c7_i32 : i32 to vector<16x128xi32>
    %20 = arith.cmpi eq, %16, %19 : vector<16x128xi32>
    %c0 = arith.constant 0 : index
    %c0_4 = arith.constant 0 : index
    %21 = vector.load %arg1[%c0, %c0_4] : memref<16x128xf32, #tpu.memory_space<vmem>>, vector<16x128xf32>
    %c0_5 = arith.constant 0 : index
    %c0_6 = arith.constant 0 : index
    %22 = vector.load %arg3[%c0_5, %c0_6] : memref<1x128xf32, #tpu.memory_space<vmem>>, vector<1x128xf32>
    %23 = vector.shape_cast %22 : vector<1x128xf32> to vector<1x128xf32>
    %24 = vector.broadcast %23 : vector<1x128xf32> to vector<16x128xf32>
    %c0_7 = arith.constant 0 : index
    %c0_8 = arith.constant 0 : index
    %25 = vector.load %arg5[%c0_7, %c0_8] : memref<1x128xf32, #tpu.memory_space<vmem>>, vector<1x128xf32>
    %26 = vector.shape_cast %25 : vector<1x128xf32> to vector<1x128xf32>
    %27 = vector.broadcast %26 : vector<1x128xf32> to vector<16x128xf32>
    %c1_i32_9 = arith.constant 1 : i32
    %28 = tpu.dynamic_rotate %21 by %c1_i32_9 dim 0 : vector<16x128xf32>, i32 -> vector<16x128xf32>
    %cst = arith.constant 0.000000e+00 : f32
    %29 = vector.broadcast %cst : f32 to vector<16x128xf32>
    %30 = arith.select %18, %29, %28 : vector<16x128xi1>, vector<16x128xf32>
    %c15_i32 = arith.constant 15 : i32
    %31 = tpu.dynamic_rotate %21 by %c15_i32 dim 0 : vector<16x128xf32>, i32 -> vector<16x128xf32>
    %cst_10 = arith.constant 0.000000e+00 : f32
    %32 = vector.broadcast %cst_10 : f32 to vector<16x128xf32>
    %33 = arith.select %20, %32, %31 : vector<16x128xi1>, vector<16x128xf32>
    %34 = arith.truncf %30 : vector<16x128xf32> to vector<16x128xbf16>
    %c0_11 = arith.constant 0 : index
    %c0_12 = arith.constant 0 : index
    %c0_13 = arith.constant 0 : index
    %35 = vector.load %arg2[%c0_11, %c0_12, %c0_13] : memref<3x128x128xbf16, #tpu.memory_space<vmem>>, vector<1x128x128xbf16>
    %36 = vector.shape_cast %35 : vector<1x128x128xbf16> to vector<128x128xbf16>
    %cst_14 = arith.constant dense<0.000000e+00> : vector<16x128xf32>
    %37 = tpu.matmul %34, %36, %cst_14 {dimension_numbers = #tpu.dot_dimension_numbers<[1], [0], [0], [1], [0, 0, 1, 1], [], []>} : vector<16x128xbf16>, vector<128x128xbf16>, vector<16x128xf32> -> vector<16x128xf32>
    %38 = arith.addf %24, %37 : vector<16x128xf32>
    %39 = arith.truncf %21 : vector<16x128xf32> to vector<16x128xbf16>
    %c1 = arith.constant 1 : index
    %c0_15 = arith.constant 0 : index
    %c0_16 = arith.constant 0 : index
    %40 = vector.load %arg2[%c1, %c0_15, %c0_16] : memref<3x128x128xbf16, #tpu.memory_space<vmem>>, vector<1x128x128xbf16>
    %41 = vector.shape_cast %40 : vector<1x128x128xbf16> to vector<128x128xbf16>
    %cst_17 = arith.constant dense<0.000000e+00> : vector<16x128xf32>
    %42 = tpu.matmul %39, %41, %cst_17 {dimension_numbers = #tpu.dot_dimension_numbers<[1], [0], [0], [1], [0, 0, 1, 1], [], []>} : vector<16x128xbf16>, vector<128x128xbf16>, vector<16x128xf32> -> vector<16x128xf32>
    %43 = arith.addf %38, %42 : vector<16x128xf32>
    %44 = arith.truncf %33 : vector<16x128xf32> to vector<16x128xbf16>
    %c2 = arith.constant 2 : index
    %c0_18 = arith.constant 0 : index
    %c0_19 = arith.constant 0 : index
    %45 = vector.load %arg2[%c2, %c0_18, %c0_19] : memref<3x128x128xbf16, #tpu.memory_space<vmem>>, vector<1x128x128xbf16>
    %46 = vector.shape_cast %45 : vector<1x128x128xbf16> to vector<128x128xbf16>
    %cst_20 = arith.constant dense<0.000000e+00> : vector<16x128xf32>
    %47 = tpu.matmul %44, %46, %cst_20 {dimension_numbers = #tpu.dot_dimension_numbers<[1], [0], [0], [1], [0, 0, 1, 1], [], []>} : vector<16x128xbf16>, vector<128x128xbf16>, vector<16x128xf32> -> vector<16x128xf32>
    %48 = arith.addf %43, %47 : vector<16x128xf32>
    %cst_21 = arith.constant 0.000000e+00 : f32
    %49 = vector.broadcast %cst_21 : f32 to vector<16x128xf32>
    %50 = arith.maximumf %48, %49 : vector<16x128xf32>
    %51 = arith.addf %21, %27 : vector<16x128xf32>
    %c1_i32_22 = arith.constant 1 : i32
    %52 = tpu.dynamic_rotate %50 by %c1_i32_22 dim 0 : vector<16x128xf32>, i32 -> vector<16x128xf32>
    %cst_23 = arith.constant 0.000000e+00 : f32
    %53 = vector.broadcast %cst_23 : f32 to vector<16x128xf32>
    %54 = arith.select %18, %53, %52 : vector<16x128xi1>, vector<16x128xf32>
    %c15_i32_24 = arith.constant 15 : i32
    %55 = tpu.dynamic_rotate %50 by %c15_i32_24 dim 0 : vector<16x128xf32>, i32 -> vector<16x128xf32>
    %cst_25 = arith.constant 0.000000e+00 : f32
    %56 = vector.broadcast %cst_25 : f32 to vector<16x128xf32>
    %57 = arith.select %20, %56, %55 : vector<16x128xi1>, vector<16x128xf32>
    %58 = arith.truncf %54 : vector<16x128xf32> to vector<16x128xbf16>
    %c0_26 = arith.constant 0 : index
    %c0_27 = arith.constant 0 : index
    %c0_28 = arith.constant 0 : index
    %59 = vector.load %arg4[%c0_26, %c0_27, %c0_28] : memref<3x128x128xbf16, #tpu.memory_space<vmem>>, vector<1x128x128xbf16>
    %60 = vector.shape_cast %59 : vector<1x128x128xbf16> to vector<128x128xbf16>
    %cst_29 = arith.constant dense<0.000000e+00> : vector<16x128xf32>
    %61 = tpu.matmul %58, %60, %cst_29 {dimension_numbers = #tpu.dot_dimension_numbers<[1], [0], [0], [1], [0, 0, 1, 1], [], []>} : vector<16x128xbf16>, vector<128x128xbf16>, vector<16x128xf32> -> vector<16x128xf32>
    %62 = arith.addf %51, %61 : vector<16x128xf32>
    %63 = arith.truncf %50 : vector<16x128xf32> to vector<16x128xbf16>
    %c1_30 = arith.constant 1 : index
    %c0_31 = arith.constant 0 : index
    %c0_32 = arith.constant 0 : index
    %64 = vector.load %arg4[%c1_30, %c0_31, %c0_32] : memref<3x128x128xbf16, #tpu.memory_space<vmem>>, vector<1x128x128xbf16>
    %65 = vector.shape_cast %64 : vector<1x128x128xbf16> to vector<128x128xbf16>
    %cst_33 = arith.constant dense<0.000000e+00> : vector<16x128xf32>
    %66 = tpu.matmul %63, %65, %cst_33 {dimension_numbers = #tpu.dot_dimension_numbers<[1], [0], [0], [1], [0, 0, 1, 1], [], []>} : vector<16x128xbf16>, vector<128x128xbf16>, vector<16x128xf32> -> vector<16x128xf32>
    %67 = arith.addf %62, %66 : vector<16x128xf32>
    %68 = arith.truncf %57 : vector<16x128xf32> to vector<16x128xbf16>
    %c2_34 = arith.constant 2 : index
    %c0_35 = arith.constant 0 : index
    %c0_36 = arith.constant 0 : index
    %69 = vector.load %arg4[%c2_34, %c0_35, %c0_36] : memref<3x128x128xbf16, #tpu.memory_space<vmem>>, vector<1x128x128xbf16>
    %70 = vector.shape_cast %69 : vector<1x128x128xbf16> to vector<128x128xbf16>
    %cst_37 = arith.constant dense<0.000000e+00> : vector<16x128xf32>
    %71 = tpu.matmul %68, %70, %cst_37 {dimension_numbers = #tpu.dot_dimension_numbers<[1], [0], [0], [1], [0, 0, 1, 1], [], []>} : vector<16x128xbf16>, vector<128x128xbf16>, vector<16x128xf32> -> vector<16x128xf32>
    %72 = arith.addf %67, %71 : vector<16x128xf32>
    %c0_38 = arith.constant 0 : index
    %c0_39 = arith.constant 0 : index
    %73 = vector.load %arg6[%c0_38, %c0_39] : memref<16x128xf32, #tpu.memory_space<vmem>>, vector<16x128xf32>
    tpu.vector_store %arg6[%c0_38, %c0_39], %72 {strides = array<i32>} : memref<16x128xf32, #tpu.memory_space<vmem>>, vector<16x128xf32>,
    return
  }
  func.func @transform_0(%arg0: i32) -> (i32, i32) {
    %c0_i32 = arith.constant 0 : i32
    %c0_i32_0 = arith.constant 0 : i32
    return %arg0, %c0_i32 : i32, i32
  }
  func.func @transform_1(%arg0: i32) -> (i32, i32, i32) {
    %c0_i32 = arith.constant 0 : i32
    %c0_i32_0 = arith.constant 0 : i32
    %c0_i32_1 = arith.constant 0 : i32
    %c0_i32_2 = arith.constant 0 : i32
    return %c0_i32, %c0_i32_0, %c0_i32_1 : i32, i32, i32
  }
  func.func @transform_2(%arg0: i32) -> (i32, i32) {
    %c0_i32 = arith.constant 0 : i32
    %c0_i32_0 = arith.constant 0 : i32
    %c0_i32_1 = arith.constant 0 : i32
    return %c0_i32, %c0_i32_0 : i32, i32
  }
  func.func @transform_3(%arg0: i32) -> (i32, i32, i32) {
    %c0_i32 = arith.constant 0 : i32
    %c0_i32_0 = arith.constant 0 : i32
    %c0_i32_1 = arith.constant 0 : i32
    %c0_i32_2 = arith.constant 0 : i32
    return %c0_i32, %c0_i32_0, %c0_i32_1 : i32, i32, i32
  }
  func.func @transform_4(%arg0: i32) -> (i32, i32) {
    %c0_i32 = arith.constant 0 : i32
    %c0_i32_0 = arith.constant 0 : i32
    %c0_i32_1 = arith.constant 0 : i32
    return %c0_i32, %c0_i32_0 : i32, i32
  }
  func.func @transform_5(%arg0: i32) -> (i32, i32) {
    %c0_i32 = arith.constant 0 : i32
    %c0_i32_0 = arith.constant 0 : i32
    return %arg0, %c0_i32 : i32, i32
  }
}

</mosaic_0001>

<llo_original>
// kernel: tpu_custom_call.1
$region0: #{tpu_custom_call.1}
  #allocation0 [shape = 'u32[]', space=smem, size = 0x4, offset = 0x4, fixed_abs, tag = 'smem constant byte address 0x4 - core index']
  #allocation1 [shape = 'u32[144,128]{1,0:T(1,128)}', space=vmem, size = 0x12000, scoped, tag = 'internal scratch']
  %s0 = inlined_call_operand.hbm [shape: f32[16,128], index: 0, kind: input, shape index: {}]
  %s1 = inlined_call_operand.hbm [shape: bf16[3,128,128], index: 1, kind: input, shape index: {}]
  %s2 = inlined_call_operand.vmem [shape: f32[1,128], index: 2, kind: input, shape index: {}]
  %s3 = inlined_call_operand.hbm [shape: bf16[3,128,128], index: 3, kind: input, shape index: {}]
  %s4 = inlined_call_operand.vmem [shape: f32[1,128], index: 4, kind: input, shape index: {}]
  %s5 = inlined_call_operand.hbm [shape: f32[16,128], index: 5, kind: output, shape index: {}]
  %s6 = sld [smem:[#allocation0]]
  $region42: #{tpu_custom_call.1} parent=0
    _
  %s8 = ssub.s32 1, %s6
  %s9 = scalar_select 0, %s8, %s6
  $region1: #{tpu_custom_call.1} parent=0
    #allocation2 [shape = 'u8[8192]{0}', space=vmem, size = 0x2000, scoped, tag = 'input window, operand 0, single buffered']
    #allocation3 [shape = 's32[1]{0}', space=sflag, size = 0x4, scoped, tag = 'scoped memory for tpu_custom_call.1']
    #allocation4 [shape = 's32[1]{0}', space=sflag, size = 0x4, scoped, tag = 'scoped memory for tpu_custom_call.1']
    #allocation5 [shape = 'u8[98304]{0}', space=vmem, size = 0x18000, scoped, tag = 'input window, operand 1, single buffered']
    #allocation6 [shape = 's32[1]{0}', space=sflag, size = 0x4, scoped, tag = 'scoped memory for tpu_custom_call.1']
    #allocation7 [shape = 'u8[98304]{0}', space=vmem, size = 0x18000, scoped, tag = 'input window, operand 3, single buffered']
    #allocation8 [shape = 'u8[8192]{0}', space=vmem, size = 0x2000, scoped, tag = 'output window, operand 0, single buffered']
    %10 = vsyncpa [#allocation3], 0
    %11 = vsyncpa [#allocation6], 0
    %12 = vsyncpa [#allocation4], 0
    // Predicated region
    $region2: #{tpu_custom_call.1} parent=1 // pred_check
      _
    $region3: #{tpu_custom_call.1} parent=1 // pred_check_branch
      %14 = sbr.rel (0) target = $region5
    $region4: #{tpu_custom_call.1} parent=1 // pred_region
      %s16 = ssub.s32 256, 256
      %17 = vsyncadd [#allocation3], %s16
      %s18 = sshll.u32 [#allocation2], 4
      %s19 = int_to_ptr.vmem [resolvable:$true] %s18
      %24 = dma.hbm_to_vmem [thread:$0]  %s0, 256, %s19, [#allocation3], 128, 128, 8
    $region5: #{tpu_custom_call.1} parent=1 // pred_fallthru
      _
    // Predicated region
    $region6: #{tpu_custom_call.1} parent=1 // pred_check
      _
    $region7: #{tpu_custom_call.1} parent=1 // pred_check_branch
      %26 = sbr.rel (0) target = $region9
    $region8: #{tpu_custom_call.1} parent=1 // pred_region
      %s28 = ssub.s32 3072, 3072
      %29 = vsyncadd [#allocation6], %s28
      %s30 = sshll.u32 [#allocation5], 4
      %s31 = int_to_ptr.vmem [resolvable:$true] %s30
      %36 = dma.hbm_to_vmem [thread:$0]  %s1, 3072, %s31, [#allocation6], 64, 64, 4
    $region9: #{tpu_custom_call.1} parent=1 // pred_fallthru
      _
    // Predicated region
    $region10: #{tpu_custom_call.1} parent=1 // pred_check
      _
    $region11: #{tpu_custom_call.1} parent=1 // pred_check_branch
      %38 = sbr.rel (0) target = $region13
    $region12: #{tpu_custom_call.1} parent=1 // pred_region
      _
    $region13: #{tpu_custom_call.1} parent=1 // pred_fallthru
      _
    // Predicated region
    $region14: #{tpu_custom_call.1} parent=1 // pred_check
      _
    $region15: #{tpu_custom_call.1} parent=1 // pred_check_branch
      %40 = sbr.rel (0) target = $region17
    $region16: #{tpu_custom_call.1} parent=1 // pred_region
      %s42 = ssub.s32 3072, 3072
      %43 = vsyncadd [#allocation6], %s42
      %s44 = sshll.u32 [#allocation7], 4
      %s45 = int_to_ptr.vmem [resolvable:$true] %s44
      %50 = dma.hbm_to_vmem [thread:$0]  %s3, 3072, %s45, [#allocation6], 64, 64, 4
    $region17: #{tpu_custom_call.1} parent=1 // pred_fallthru
      _
    // Predicated region
    $region18: #{tpu_custom_call.1} parent=1 // pred_check
      _
    $region19: #{tpu_custom_call.1} parent=1 // pred_check_branch
      %52 = sbr.rel (0) target = $region21
    $region20: #{tpu_custom_call.1} parent=1 // pred_region
      _
    $region21: #{tpu_custom_call.1} parent=1 // pred_fallthru
      _
    // Predicated region
    $region22: #{tpu_custom_call.1} parent=1 // pred_check
      _
    $region23: #{tpu_custom_call.1} parent=1 // pred_check_branch
      %54 = sbr.rel (0) target = $region25
    $region24: #{tpu_custom_call.1} parent=1 // pred_region
      %55 = dma.done [#allocation3], 256
    $region25: #{tpu_custom_call.1} parent=1 // pred_fallthru
      _
    // Predicated region
    $region26: #{tpu_custom_call.1} parent=1 // pred_check
      _
    $region27: #{tpu_custom_call.1} parent=1 // pred_check_branch
      %57 = sbr.rel (0) target = $region29
    $region28: #{tpu_custom_call.1} parent=1 // pred_region
      %58 = dma.done [#allocation6], 3072
    $region29: #{tpu_custom_call.1} parent=1 // pred_fallthru
      _
    // Predicated region
    $region30: #{tpu_custom_call.1} parent=1 // pred_check
      _
    $region31: #{tpu_custom_call.1} parent=1 // pred_check_branch
      %60 = sbr.rel (0) target = $region33
    $region32: #{tpu_custom_call.1} parent=1 // pred_region
      %61 = dma.done [#allocation6], 3072
    $region33: #{tpu_custom_call.1} parent=1 // pred_fallthru
      _
    %v63 = vlaneseq
    %v64 = vshrl.u32 %v63, 7
    %v65 = vadd.s32 %v64, 8
    %vm66 = vcmp.lt.s32.totalorder %v64, 0
    %v67 = vsub.s32 0, %v64
    %v68 = vsel %vm66, %v67, %v64
    %v69 = vshrl.u32 %v68, 3
    %v70 = vand.u32 %v68, 7
    %v71 = vsub.s32 0, %v70
    %v72 = vsel %vm66, %v71, %v70
    %vm73 = vcmp.lt.s32.totalorder %v65, 0
    %v74 = vsub.s32 0, %v65
    %v75 = vsel %vm73, %v74, %v65
    %v76 = vshrl.u32 %v75, 3
    %v77 = vand.u32 %v75, 7
    %v78 = vsub.s32 0, %v77
    %v79 = vsel %vm73, %v78, %v77
    %vm80 = vcmp.ne.s32.totalorder %v72, 0
    %vm81 = vcmp.ne.s32.totalorder %v79, 0
    %vm82 = vcmp.lt.s32.totalorder %v72, 0
    %vm83 = vcmp.lt.s32.totalorder %v79, 0
    %vm84 = vmand %vm82, %vm80
    %vm85 = vmand %vm83, %vm81
    %v86 = vadd.s32 %v72, 8
    %v87 = vadd.s32 %v79, 8
    %v88 = vsel %vm84, %v86, %v72
    %v89 = vsel %vm85, %v87, %v79
    %vm90 = vcmp.eq.s32.totalorder %v88, 0
    %vm91 = vcmp.eq.s32.totalorder %v89, 0
    %vm92 = vcmp.eq.s32.totalorder %v88, 7
    %vm93 = vcmp.eq.s32.totalorder %v89, 7
    %v94 = vld [vmem:[#allocation2] sm:$0xff]
    %v95 = vld [vmem:[#allocation2 + $0x8] sm:$0xff]
    %v96 = vld [vmem:[%s2] sm:$0x1]
    %v98 = vlaneseq
    %v99 = vshrl.u32 %v98, 7
    %v100 = vsub.s32 0, %v99
    %v101 = vrot.slane %v96, %v100
    %v103 = vld [vmem:[%s4] sm:$0x1]
    %v105 = vlaneseq
    %v106 = vshrl.u32 %v105, 7
    %v107 = vsub.s32 0, %v106
    %v108 = vrot.slane %v103, %v107
    %v110 = vrot.slane %v94, 7
    %v111 = vrot.slane %v95, 7
    %vm112 = vcmp.lt.s32.totalorder %v64, 1
    %v113 = vsel %vm112, %v110, %v111
    %v114 = vsel %vm112, %v111, %v110
    %v115 = vsel %vm90, 0.0, %v114
    %v116 = vsel %vm91, 0.0, %v113
    %v117 = vrot.slane %v94, 1
    %v118 = vrot.slane %v95, 1
    %vm119 = vcmp.lt.s32.totalorder %v64, 7
    %v120 = vsel %vm119, %v117, %v118
    %v121 = vsel %vm119, %v118, %v117
    %v122 = vsel %vm92, 0.0, %v120
    %v123 = vsel %vm93, 0.0, %v121
    %v124 = vpack.c.bf16 %v116, %v115
    %v125 = vld [vmem:[#allocation5] sm:$0xf]
    %v126 = vld [vmem:[#allocation5 + $0x4] sm:$0xf]
    %v127 = vld [vmem:[#allocation5 + $0x8] sm:$0xf]
    %v128 = vld [vmem:[#allocation5 + $0xc] sm:$0xf]
    %v129 = vld [vmem:[#allocation5 + $0x10] sm:$0xf]
    %v130 = vld [vmem:[#allocation5 + $0x14] sm:$0xf]
    %v131 = vld [vmem:[#allocation5 + $0x18] sm:$0xf]
    %v132 = vld [vmem:[#allocation5 + $0x1c] sm:$0xf]
    %v133 = vld [vmem:[#allocation5 + $0x20] sm:$0xf]
    %v134 = vld [vmem:[#allocation5 + $0x24] sm:$0xf]
    %v135 = vld [vmem:[#allocation5 + $0x28] sm:$0xf]
    %v136 = vld [vmem:[#allocation5 + $0x2c] sm:$0xf]
    %v137 = vld [vmem:[#allocation5 + $0x30] sm:$0xf]
    %v138 = vld [vmem:[#allocation5 + $0x34] sm:$0xf]
    %v139 = vld [vmem:[#allocation5 + $0x38] sm:$0xf]
    %v140 = vld [vmem:[#allocation5 + $0x3c] sm:$0xf]
    %v157 = vunpack.c.l.b16 %v125
    %v158 = vunpack.c.l.b16 %v126
    %v159 = vunpack.c.l.b16 %v127
    %v160 = vunpack.c.l.b16 %v128
    %v161 = vunpack.c.l.b16 %v129
    %v162 = vunpack.c.l.b16 %v130
    %v163 = vunpack.c.l.b16 %v131
    %v164 = vunpack.c.l.b16 %v132
    %v165 = vunpack.c.l.b16 %v133
    %v166 = vunpack.c.l.b16 %v134
    %v167 = vunpack.c.l.b16 %v135
    %v168 = vunpack.c.l.b16 %v136
    %v169 = vunpack.c.l.b16 %v137
    %v170 = vunpack.c.l.b16 %v138
    %v171 = vunpack.c.l.b16 %v139
    %v172 = vunpack.c.l.b16 %v140
    %v173 = vpack.c.b16 %v158, %v157
    %v174 = vpack.c.b16 %v160, %v159
    %v175 = vpack.c.b16 %v162, %v161
    %v176 = vpack.c.b16 %v164, %v163
    %v177 = vpack.c.b16 %v166, %v165
    %v178 = vpack.c.b16 %v168, %v167
    %v179 = vpack.c.b16 %v170, %v169
    %v180 = vpack.c.b16 %v172, %v171
    %189 = vmatprep.subr.bf16.mxu0 0
    %190 = vmatpush1.bf16.msra.mxu0 %v173
    %191 = vmatprep.subr.bf16.mxu0 0
    %192 = vmatpush1.bf16.msra.mxu0 %v174
    %193 = vmatprep.subr.bf16.mxu0 0
    %194 = vmatpush1.bf16.msra.mxu0 %v175
    %195 = vmatprep.subr.bf16.mxu0 0
    %196 = vmatpush1.bf16.msra.mxu0 %v176
    %197 = vmatprep.subr.bf16.mxu0 0
    %198 = vmatpush1.bf16.msra.mxu0 %v177
    %199 = vmatprep.subr.bf16.mxu0 0
    %200 = vmatpush1.bf16.msra.mxu0 %v178
    %201 = vmatprep.subr.bf16.mxu0 0
    %202 = vmatpush1.bf16.msra.mxu0 %v179
    %203 = vmatprep.subr.bf16.mxu0 0
    %204 = vmatpush1.bf16.msra.mxu0 %v180
    %205 = vmatprep.subr.bf16.mxu0 0
    %206 = vmatpush1.bf16.msra.mxu0 0
    %207 = vmatprep.subr.bf16.mxu0 0
    %208 = vmatpush1.bf16.msra.mxu0 0
    %209 = vmatprep.subr.bf16.mxu0 0
    %210 = vmatpush1.bf16.msra.mxu0 0
    %211 = vmatprep.subr.bf16.mxu0 0
    %212 = vmatpush1.bf16.msra.mxu0 0
    %213 = vmatprep.subr.bf16.mxu0 0
    %214 = vmatpush1.bf16.msra.mxu0 0
    %215 = vmatprep.subr.bf16.mxu0 0
    %216 = vmatpush1.bf16.msra.mxu0 0
    %217 = vmatprep.subr.bf16.mxu0 0
    %218 = vmatpush1.bf16.msra.mxu0 0
    %219 = vmatprep.subr.bf16.mxu0 0
    %220 = vmatpush1.bf16.msra.mxu0 0
    %221 = vmatprep.mubr.bf16.mxu0 0
    %222 = vmatmul.mubr.bf16.gmra.mrb[0].mxu0 %v124
    %v223 = vpop.f32.mrb[0].mxu0
    %v224 = vadd.f32 0.0, %v223
    %v225 = vpop.f32.mrb[0].mxu0
    %v226 = vpop.f32.mrb[0].mxu0
    %v227 = vadd.f32 0.0, %v226
    %v228 = vpop.f32.mrb[0].mxu0
    %229 = vdwg.mxu0
    %v230 = vadd.f32 %v101, %v224
    %v231 = vadd.f32 %v101, %v227
    %v232 = vpack.c.bf16 %v95, %v94
    %s233 = scalar_lea.vmem [#allocation5], 64
    %v234 = vld [vmem:[%s233] sm:$0xf]
    %v235 = vld [vmem:[%s233 + $0x4] sm:$0xf]
    %v236 = vld [vmem:[%s233 + $0x8] sm:$0xf]
    %v237 = vld [vmem:[%s233 + $0xc] sm:$0xf]
    %v238 = vld [vmem:[%s233 + $0x10] sm:$0xf]
    %v239 = vld [vmem:[%s233 + $0x14] sm:$0xf]
    %v240 = vld [vmem:[%s233 + $0x18] sm:$0xf]
    %v241 = vld [vmem:[%s233 + $0x1c] sm:$0xf]
    %v242 = vld [vmem:[%s233 + $0x20] sm:$0xf]
    %v243 = vld [vmem:[%s233 + $0x24] sm:$0xf]
    %v244 = vld [vmem:[%s233 + $0x28] sm:$0xf]
    %v245 = vld [vmem:[%s233 + $0x2c] sm:$0xf]
    %v246 = vld [vmem:[%s233 + $0x30] sm:$0xf]
    %v247 = vld [vmem:[%s233 + $0x34] sm:$0xf]
    %v248 = vld [vmem:[%s233 + $0x38] sm:$0xf]
    %v249 = vld [vmem:[%s233 + $0x3c] sm:$0xf]
    %v266 = vunpack.c.l.b16 %v234
    %v267 = vunpack.c.l.b16 %v235
    %v268 = vunpack.c.l.b16 %v236
    %v269 = vunpack.c.l.b16 %v237
    %v270 = vunpack.c.l.b16 %v238
    %v271 = vunpack.c.l.b16 %v239
    %v272 = vunpack.c.l.b16 %v240
    %v273 = vunpack.c.l.b16 %v241
    %v274 = vunpack.c.l.b16 %v242
    %v275 = vunpack.c.l.b16 %v243
    %v276 = vunpack.c.l.b16 %v244
    %v277 = vunpack.c.l.b16 %v245
    %v278 = vunpack.c.l.b16 %v246
    %v279 = vunpack.c.l.b16 %v247
    %v280 = vunpack.c.l.b16 %v248
    %v281 = vunpack.c.l.b16 %v249
    %v282 = vpack.c.b16 %v267, %v266
    %v283 = vpack.c.b16 %v269, %v268
    %v284 = vpack.c.b16 %v271, %v270
    %v285 = vpack.c.b16 %v273, %v272
    %v286 = vpack.c.b16 %v275, %v274
    %v287 = vpack.c.b16 %v277, %v276
    %v288 = vpack.c.b16 %v279, %v278
    %v289 = vpack.c.b16 %v281, %v280
    %298 = vmatprep.subr.bf16.mxu0 0
    %299 = vmatpush1.bf16.msra.mxu0 %v282
    %300 = vmatprep.subr.bf16.mxu0 0
    %301 = vmatpush1.bf16.msra.mxu0 %v283
    %302 = vmatprep.subr.bf16.mxu0 0
    %303 = vmatpush1.bf16.msra.mxu0 %v284
    %304 = vmatprep.subr.bf16.mxu0 0
    %305 = vmatpush1.bf16.msra.mxu0 %v285
    %306 = vmatprep.subr.bf16.mxu0 0
    %307 = vmatpush1.bf16.msra.mxu0 %v286
    %308 = vmatprep.subr.bf16.mxu0 0
    %309 = vmatpush1.bf16.msra.mxu0 %v287
    %310 = vmatprep.subr.bf16.mxu0 0
    %311 = vmatpush1.bf16.msra.mxu0 %v288
    %312 = vmatprep.subr.bf16.mxu0 0
    %313 = vmatpush1.bf16.msra.mxu0 %v289
    %314 = vmatprep.subr.bf16.mxu0 0
    %315 = vmatpush1.bf16.msra.mxu0 0
    %316 = vmatprep.subr.bf16.mxu0 0
    %317 = vmatpush1.bf16.msra.mxu0 0
    %318 = vmatprep.subr.bf16.mxu0 0
    %319 = vmatpush1.bf16.msra.mxu0 0
    %320 = vmatprep.subr.bf16.mxu0 0
    %321 = vmatpush1.bf16.msra.mxu0 0
    %322 = vmatprep.subr.bf16.mxu0 0
    %323 = vmatpush1.bf16.msra.mxu0 0
    %324 = vmatprep.subr.bf16.mxu0 0
    %325 = vmatpush1.bf16.msra.mxu0 0
    %326 = vmatprep.subr.bf16.mxu0 0
    %327 = vmatpush1.bf16.msra.mxu0 0
    %328 = vmatprep.subr.bf16.mxu0 0
    %329 = vmatpush1.bf16.msra.mxu0 0
    %330 = vmatprep.mubr.bf16.mxu0 0
    %331 = vmatmul.mubr.bf16.gmra.mrb[0].mxu0 %v232
    %v332 = vpop.f32.mrb[0].mxu0
    %v333 = vadd.f32 0.0, %v332
    %v334 = vpop.f32.mrb[0].mxu0
    %v335 = vpop.f32.mrb[0].mxu0
    %v336 = vadd.f32 0.0, %v335
    %v337 = vpop.f32.mrb[0].mxu0
    %338 = vdwg.mxu0
    %v339 = vadd.f32 %v230, %v333
    %v340 = vadd.f32 %v231, %v336
    %v341 = vpack.c.bf16 %v123, %v122
    %s342 = scalar_lea.vmem [#allocation5], 128
    %v343 = vld [vmem:[%s342] sm:$0xf]
    %v344 = vld [vmem:[%s342 + $0x4] sm:$0xf]
    %v345 = vld [vmem:[%s342 + $0x8] sm:$0xf]
    %v346 = vld [vmem:[%s342 + $0xc] sm:$0xf]
    %v347 = vld [vmem:[%s342 + $0x10] sm:$0xf]
    %v348 = vld [vmem:[%s342 + $0x14] sm:$0xf]
    %v349 = vld [vmem:[%s342 + $0x18] sm:$0xf]
    %v350 = vld [vmem:[%s342 + $0x1c] sm:$0xf]
    %v351 = vld [vmem:[%s342 + $0x20] sm:$0xf]
    %v352 = vld [vmem:[%s342 + $0x24] sm:$0xf]
    %v353 = vld [vmem:[%s342 + $0x28] sm:$0xf]
    %v354 = vld [vmem:[%s342 + $0x2c] sm:$0xf]
    %v355 = vld [vmem:[%s342 + $0x30] sm:$0xf]
    %v356 = vld [vmem:[%s342 + $0x34] sm:$0xf]
    %v357 = vld [vmem:[%s342 + $0x38] sm:$0xf]
    %v358 = vld [vmem:[%s342 + $0x3c] sm:$0xf]
    %v375 = vunpack.c.l.b16 %v343
    %v376 = vunpack.c.l.b16 %v344
    %v377 = vunpack.c.l.b16 %v345
    %v378 = vunpack.c.l.b16 %v346
    %v379 = vunpack.c.l.b16 %v347
    %v380 = vunpack.c.l.b16 %v348
    %v381 = vunpack.c.l.b16 %v349
    %v382 = vunpack.c.l.b16 %v350
    %v383 = vunpack.c.l.b16 %v351
    %v384 = vunpack.c.l.b16 %v352
    %v385 = vunpack.c.l.b16 %v353
    %v386 = vunpack.c.l.b16 %v354
    %v387 = vunpack.c.l.b16 %v355
    %v388 = vunpack.c.l.b16 %v356
    %v389 = vunpack.c.l.b16 %v357
    %v390 = vunpack.c.l.b16 %v358
    %v391 = vpack.c.b16 %v376, %v375
    %v392 = vpack.c.b16 %v378, %v377
    %v393 = vpack.c.b16 %v380, %v379
    %v394 = vpack.c.b16 %v382, %v381
    %v395 = vpack.c.b16 %v384, %v383
    %v396 = vpack.c.b16 %v386, %v385
    %v397 = vpack.c.b16 %v388, %v387
    %v398 = vpack.c.b16 %v390, %v389
    %407 = vmatprep.subr.bf16.mxu0 0
    %408 = vmatpush1.bf16.msra.mxu0 %v391
    %409 = vmatprep.subr.bf16.mxu0 0
    %410 = vmatpush1.bf16.msra.mxu0 %v392
    %411 = vmatprep.subr.bf16.mxu0 0
    %412 = vmatpush1.bf16.msra.mxu0 %v393
    %413 = vmatprep.subr.bf16.mxu0 0
    %414 = vmatpush1.bf16.msra.mxu0 %v394
    %415 = vmatprep.subr.bf16.mxu0 0
    %416 = vmatpush1.bf16.msra.mxu0 %v395
    %417 = vmatprep.subr.bf16.mxu0 0
    %418 = vmatpush1.bf16.msra.mxu0 %v396
    %419 = vmatprep.subr.bf16.mxu0 0
    %420 = vmatpush1.bf16.msra.mxu0 %v397
    %421 = vmatprep.subr.bf16.mxu0 0
    %422 = vmatpush1.bf16.msra.mxu0 %v398
    %423 = vmatprep.subr.bf16.mxu0 0
    %424 = vmatpush1.bf16.msra.mxu0 0
    %425 = vmatprep.subr.bf16.mxu0 0
    %426 = vmatpush1.bf16.msra.mxu0 0
    %427 = vmatprep.subr.bf16.mxu0 0
    %428 = vmatpush1.bf16.msra.mxu0 0
    %429 = vmatprep.subr.bf16.mxu0 0
    %430 = vmatpush1.bf16.msra.mxu0 0
    %431 = vmatprep.subr.bf16.mxu0 0
    %432 = vmatpush1.bf16.msra.mxu0 0
    %433 = vmatprep.subr.bf16.mxu0 0
    %434 = vmatpush1.bf16.msra.mxu0 0
    %435 = vmatprep.subr.bf16.mxu0 0
    %436 = vmatpush1.bf16.msra.mxu0 0
    %437 = vmatprep.subr.bf16.mxu0 0
    %438 = vmatpush1.bf16.msra.mxu0 0
    %439 = vmatprep.mubr.bf16.mxu0 0
    %440 = vmatmul.mubr.bf16.gmra.mrb[0].mxu0 %v341
    %v441 = vpop.f32.mrb[0].mxu0
    %v442 = vadd.f32 0.0, %v441
    %v443 = vpop.f32.mrb[0].mxu0
    %v444 = vpop.f32.mrb[0].mxu0
    %v445 = vadd.f32 0.0, %v444
    %v446 = vpop.f32.mrb[0].mxu0
    %447 = vdwg.mxu0
    %v448 = vadd.f32 %v339, %v442
    %v449 = vadd.f32 %v340, %v445
    %v450 = vmax.f32 %v448, 0.0
    %v451 = vmax.f32 %v449, 0.0
    %v452 = vadd.f32 %v94, %v108
    %v453 = vadd.f32 %v95, %v108
    %v454 = vrot.slane %v450, 7
    %v455 = vrot.slane %v451, 7
    %v456 = vsel %vm112, %v454, %v455
    %v457 = vsel %vm112, %v455, %v454
    %v458 = vsel %vm90, 0.0, %v457
    %v459 = vsel %vm91, 0.0, %v456
    %v460 = vrot.slane %v450, 1
    %v461 = vrot.slane %v451, 1
    %v462 = vsel %vm119, %v460, %v461
    %v463 = vsel %vm119, %v461, %v460
    %v464 = vsel %vm92, 0.0, %v462
    %v465 = vsel %vm93, 0.0, %v463
    %v466 = vpack.c.bf16 %v459, %v458
    %v467 = vld [vmem:[#allocation7] sm:$0xf]
    %v468 = vld [vmem:[#allocation7 + $0x4] sm:$0xf]
    %v469 = vld [vmem:[#allocation7 + $0x8] sm:$0xf]
    %v470 = vld [vmem:[#allocation7 + $0xc] sm:$0xf]
    %v471 = vld [vmem:[#allocation7 + $0x10] sm:$0xf]
    %v472 = vld [vmem:[#allocation7 + $0x14] sm:$0xf]
    %v473 = vld [vmem:[#allocation7 + $0x18] sm:$0xf]
    %v474 = vld [vmem:[#allocation7 + $0x1c] sm:$0xf]
    %v475 = vld [vmem:[#allocation7 + $0x20] sm:$0xf]
    %v476 = vld [vmem:[#allocation7 + $0x24] sm:$0xf]
    %v477 = vld [vmem:[#allocation7 + $0x28] sm:$0xf]
    %v478 = vld [vmem:[#allocation7 + $0x2c] sm:$0xf]
    %v479 = vld [vmem:[#allocation7 + $0x30] sm:$0xf]
    %v480 = vld [vmem:[#allocation7 + $0x34] sm:$0xf]
    %v481 = vld [vmem:[#allocation7 + $0x38] sm:$0xf]
    %v482 = vld [vmem:[#allocation7 + $0x3c] sm:$0xf]
    %v499 = vunpack.c.l.b16 %v467
    %v500 = vunpack.c.l.b16 %v468
    %v501 = vunpack.c.l.b16 %v469
    %v502 = vunpack.c.l.b16 %v470
    %v503 = vunpack.c.l.b16 %v471
    %v504 = vunpack.c.l.b16 %v472
    %v505 = vunpack.c.l.b16 %v473
    %v506 = vunpack.c.l.b16 %v474
    %v507 = vunpack.c.l.b16 %v475
    %v508 = vunpack.c.l.b16 %v476
    %v509 = vunpack.c.l.b16 %v477
    %v510 = vunpack.c.l.b16 %v478
    %v511 = vunpack.c.l.b16 %v479
    %v512 = vunpack.c.l.b16 %v480
    %v513 = vunpack.c.l.b16 %v481
    %v514 = vunpack.c.l.b16 %v482
    %v515 = vpack.c.b16 %v500, %v499
    %v516 = vpack.c.b16 %v502, %v501
    %v517 = vpack.c.b16 %v504, %v503
    %v518 = vpack.c.b16 %v506, %v505
    %v519 = vpack.c.b16 %v508, %v507
    %v520 = vpack.c.b16 %v510, %v509
    %v521 = vpack.c.b16 %v512, %v511
    %v522 = vpack.c.b16 %v514, %v513
    %531 = vmatprep.subr.bf16.mxu0 0
    %532 = vmatpush1.bf16.msra.mxu0 %v515
    %533 = vmatprep.subr.bf16.mxu0 0
    %534 = vmatpush1.bf16.msra.mxu0 %v516
    %535 = vmatprep.subr.bf16.mxu0 0
    %536 = vmatpush1.bf16.msra.mxu0 %v517
    %537 = vmatprep.subr.bf16.mxu0 0
    %538 = vmatpush1.bf16.msra.mxu0 %v518
    %539 = vmatprep.subr.bf16.mxu0 0
    %540 = vmatpush1.bf16.msra.mxu0 %v519
    %541 = vmatprep.subr.bf16.mxu0 0
    %542 = vmatpush1.bf16.msra.mxu0 %v520
    %543 = vmatprep.subr.bf16.mxu0 0
    %544 = vmatpush1.bf16.msra.mxu0 %v521
    %545 = vmatprep.subr.bf16.mxu0 0
    %546 = vmatpush1.bf16.msra.mxu0 %v522
    %547 = vmatprep.subr.bf16.mxu0 0
    %548 = vmatpush1.bf16.msra.mxu0 0
    %549 = vmatprep.subr.bf16.mxu0 0
    %550 = vmatpush1.bf16.msra.mxu0 0
    %551 = vmatprep.subr.bf16.mxu0 0
    %552 = vmatpush1.bf16.msra.mxu0 0
    %553 = vmatprep.subr.bf16.mxu0 0
    %554 = vmatpush1.bf16.msra.mxu0 0
    %555 = vmatprep.subr.bf16.mxu0 0
    %556 = vmatpush1.bf16.msra.mxu0 0
    %557 = vmatprep.subr.bf16.mxu0 0
    %558 = vmatpush1.bf16.msra.mxu0 0
    %559 = vmatprep.subr.bf16.mxu0 0
    %560 = vmatpush1.bf16.msra.mxu0 0
    %561 = vmatprep.subr.bf16.mxu0 0
    %562 = vmatpush1.bf16.msra.mxu0 0
    %563 = vmatprep.mubr.bf16.mxu0 0
    %564 = vmatmul.mubr.bf16.gmra.mrb[0].mxu0 %v466
    %v565 = vpop.f32.mrb[0].mxu0
    %v566 = vadd.f32 0.0, %v565
    %v567 = vpop.f32.mrb[0].mxu0
    %v568 = vpop.f32.mrb[0].mxu0
    %v569 = vadd.f32 0.0, %v568
    %v570 = vpop.f32.mrb[0].mxu0
    %571 = vdwg.mxu0
    %v572 = vadd.f32 %v452, %v566
    %v573 = vadd.f32 %v453, %v569
    %v574 = vpack.c.bf16 %v451, %v450
    %s575 = scalar_lea.vmem [#allocation7], 64
    %v576 = vld [vmem:[%s575] sm:$0xf]
    %v577 = vld [vmem:[%s575 + $0x4] sm:$0xf]
    %v578 = vld [vmem:[%s575 + $0x8] sm:$0xf]
    %v579 = vld [vmem:[%s575 + $0xc] sm:$0xf]
    %v580 = vld [vmem:[%s575 + $0x10] sm:$0xf]
    %v581 = vld [vmem:[%s575 + $0x14] sm:$0xf]
    %v582 = vld [vmem:[%s575 + $0x18] sm:$0xf]
    %v583 = vld [vmem:[%s575 + $0x1c] sm:$0xf]
    %v584 = vld [vmem:[%s575 + $0x20] sm:$0xf]
    %v585 = vld [vmem:[%s575 + $0x24] sm:$0xf]
    %v586 = vld [vmem:[%s575 + $0x28] sm:$0xf]
    %v587 = vld [vmem:[%s575 + $0x2c] sm:$0xf]
    %v588 = vld [vmem:[%s575 + $0x30] sm:$0xf]
    %v589 = vld [vmem:[%s575 + $0x34] sm:$0xf]
    %v590 = vld [vmem:[%s575 + $0x38] sm:$0xf]
    %v591 = vld [vmem:[%s575 + $0x3c] sm:$0xf]
    %v608 = vunpack.c.l.b16 %v576
    %v609 = vunpack.c.l.b16 %v577
    %v610 = vunpack.c.l.b16 %v578
    %v611 = vunpack.c.l.b16 %v579
    %v612 = vunpack.c.l.b16 %v580
    %v613 = vunpack.c.l.b16 %v581
    %v614 = vunpack.c.l.b16 %v582
    %v615 = vunpack.c.l.b16 %v583
    %v616 = vunpack.c.l.b16 %v584
    %v617 = vunpack.c.l.b16 %v585
    %v618 = vunpack.c.l.b16 %v586
    %v619 = vunpack.c.l.b16 %v587
    %v620 = vunpack.c.l.b16 %v588
    %v621 = vunpack.c.l.b16 %v589
    %v622 = vunpack.c.l.b16 %v590
    %v623 = vunpack.c.l.b16 %v591
    %v624 = vpack.c.b16 %v609, %v608
    %v625 = vpack.c.b16 %v611, %v610
    %v626 = vpack.c.b16 %v613, %v612
    %v627 = vpack.c.b16 %v615, %v614
    %v628 = vpack.c.b16 %v617, %v616
    %v629 = vpack.c.b16 %v619, %v618
    %v630 = vpack.c.b16 %v621, %v620
    %v631 = vpack.c.b16 %v623, %v622
    %640 = vmatprep.subr.bf16.mxu0 0
    %641 = vmatpush1.bf16.msra.mxu0 %v624
    %642 = vmatprep.subr.bf16.mxu0 0
    %643 = vmatpush1.bf16.msra.mxu0 %v625
    %644 = vmatprep.subr.bf16.mxu0 0
    %645 = vmatpush1.bf16.msra.mxu0 %v626
    %646 = vmatprep.subr.bf16.mxu0 0
    %647 = vmatpush1.bf16.msra.mxu0 %v627
    %648 = vmatprep.subr.bf16.mxu0 0
    %649 = vmatpush1.bf16.msra.mxu0 %v628
    %650 = vmatprep.subr.bf16.mxu0 0
    %651 = vmatpush1.bf16.msra.mxu0 %v629
    %652 = vmatprep.subr.bf16.mxu0 0
    %653 = vmatpush1.bf16.msra.mxu0 %v630
    %654 = vmatprep.subr.bf16.mxu0 0
    %655 = vmatpush1.bf16.msra.mxu0 %v631
    %656 = vmatprep.subr.bf16.mxu0 0
    %657 = vmatpush1.bf16.msra.mxu0 0
    %658 = vmatprep.subr.bf16.mxu0 0
    %659 = vmatpush1.bf16.msra.mxu0 0
    %660 = vmatprep.subr.bf16.mxu0 0
    %661 = vmatpush1.bf16.msra.mxu0 0
    %662 = vmatprep.subr.bf16.mxu0 0
    %663 = vmatpush1.bf16.msra.mxu0 0
    %664 = vmatprep.subr.bf16.mxu0 0
    %665 = vmatpush1.bf16.msra.mxu0 0
    %666 = vmatprep.subr.bf16.mxu0 0
    %667 = vmatpush1.bf16.msra.mxu0 0
    %668 = vmatprep.subr.bf16.mxu0 0
    %669 = vmatpush1.bf16.msra.mxu0 0
    %670 = vmatprep.subr.bf16.mxu0 0
    %671 = vmatpush1.bf16.msra.mxu0 0
    %672 = vmatprep.mubr.bf16.mxu0 0
    %673 = vmatmul.mubr.bf16.gmra.mrb[0].mxu0 %v574
    %v674 = vpop.f32.mrb[0].mxu0
    %v675 = vadd.f32 0.0, %v674
    %v676 = vpop.f32.mrb[0].mxu0
    %v677 = vpop.f32.mrb[0].mxu0
    %v678 = vadd.f32 0.0, %v677
    %v679 = vpop.f32.mrb[0].mxu0
    %680 = vdwg.mxu0
    %v681 = vadd.f32 %v572, %v675
    %v682 = vadd.f32 %v573, %v678
    %v683 = vpack.c.bf16 %v465, %v464
    %s684 = scalar_lea.vmem [#allocation7], 128
    %v685 = vld [vmem:[%s684] sm:$0xf]
    %v686 = vld [vmem:[%s684 + $0x4] sm:$0xf]
    %v687 = vld [vmem:[%s684 + $0x8] sm:$0xf]
    %v688 = vld [vmem:[%s684 + $0xc] sm:$0xf]
    %v689 = vld [vmem:[%s684 + $0x10] sm:$0xf]
    %v690 = vld [vmem:[%s684 + $0x14] sm:$0xf]
    %v691 = vld [vmem:[%s684 + $0x18] sm:$0xf]
    %v692 = vld [vmem:[%s684 + $0x1c] sm:$0xf]
    %v693 = vld [vmem:[%s684 + $0x20] sm:$0xf]
    %v694 = vld [vmem:[%s684 + $0x24] sm:$0xf]
    %v695 = vld [vmem:[%s684 + $0x28] sm:$0xf]
    %v696 = vld [vmem:[%s684 + $0x2c] sm:$0xf]
    %v697 = vld [vmem:[%s684 + $0x30] sm:$0xf]
    %v698 = vld [vmem:[%s684 + $0x34] sm:$0xf]
    %v699 = vld [vmem:[%s684 + $0x38] sm:$0xf]
    %v700 = vld [vmem:[%s684 + $0x3c] sm:$0xf]
    %v717 = vunpack.c.l.b16 %v685
    %v718 = vunpack.c.l.b16 %v686
    %v719 = vunpack.c.l.b16 %v687
    %v720 = vunpack.c.l.b16 %v688
    %v721 = vunpack.c.l.b16 %v689
    %v722 = vunpack.c.l.b16 %v690
    %v723 = vunpack.c.l.b16 %v691
    %v724 = vunpack.c.l.b16 %v692
    %v725 = vunpack.c.l.b16 %v693
    %v726 = vunpack.c.l.b16 %v694
    %v727 = vunpack.c.l.b16 %v695
    %v728 = vunpack.c.l.b16 %v696
    %v729 = vunpack.c.l.b16 %v697
    %v730 = vunpack.c.l.b16 %v698
    %v731 = vunpack.c.l.b16 %v699
    %v732 = vunpack.c.l.b16 %v700
    %v733 = vpack.c.b16 %v718, %v717
    %v734 = vpack.c.b16 %v720, %v719
    %v735 = vpack.c.b16 %v722, %v721
    %v736 = vpack.c.b16 %v724, %v723
    %v737 = vpack.c.b16 %v726, %v725
    %v738 = vpack.c.b16 %v728, %v727
    %v739 = vpack.c.b16 %v730, %v729
    %v740 = vpack.c.b16 %v732, %v731
    %749 = vmatprep.subr.bf16.mxu0 0
    %750 = vmatpush1.bf16.msra.mxu0 %v733
    %751 = vmatprep.subr.bf16.mxu0 0
    %752 = vmatpush1.bf16.msra.mxu0 %v734
    %753 = vmatprep.subr.bf16.mxu0 0
    %754 = vmatpush1.bf16.msra.mxu0 %v735
    %755 = vmatprep.subr.bf16.mxu0 0
    %756 = vmatpush1.bf16.msra.mxu0 %v736
    %757 = vmatprep.subr.bf16.mxu0 0
    %758 = vmatpush1.bf16.msra.mxu0 %v737
    %759 = vmatprep.subr.bf16.mxu0 0
    %760 = vmatpush1.bf16.msra.mxu0 %v738
    %761 = vmatprep.subr.bf16.mxu0 0
    %762 = vmatpush1.bf16.msra.mxu0 %v739
    %763 = vmatprep.subr.bf16.mxu0 0
    %764 = vmatpush1.bf16.msra.mxu0 %v740
    %765 = vmatprep.subr.bf16.mxu0 0
    %766 = vmatpush1.bf16.msra.mxu0 0
    %767 = vmatprep.subr.bf16.mxu0 0
    %768 = vmatpush1.bf16.msra.mxu0 0
    %769 = vmatprep.subr.bf16.mxu0 0
    %770 = vmatpush1.bf16.msra.mxu0 0
    %771 = vmatprep.subr.bf16.mxu0 0
    %772 = vmatpush1.bf16.msra.mxu0 0
    %773 = vmatprep.subr.bf16.mxu0 0
    %774 = vmatpush1.bf16.msra.mxu0 0
    %775 = vmatprep.subr.bf16.mxu0 0
    %776 = vmatpush1.bf16.msra.mxu0 0
    %777 = vmatprep.subr.bf16.mxu0 0
    %778 = vmatpush1.bf16.msra.mxu0 0
    %779 = vmatprep.subr.bf16.mxu0 0
    %780 = vmatpush1.bf16.msra.mxu0 0
    %781 = vmatprep.mubr.bf16.mxu0 0
    %782 = vmatmul.mubr.bf16.gmra.mrb[0].mxu0 %v683
    %v783 = vpop.f32.mrb[0].mxu0
    %v784 = vadd.f32 0.0, %v783
    %v785 = vpop.f32.mrb[0].mxu0
    %v786 = vpop.f32.mrb[0].mxu0
    %v787 = vadd.f32 0.0, %v786
    %v788 = vpop.f32.mrb[0].mxu0
    %789 = vdwg.mxu0
    %v790 = vadd.f32 %v681, %v784
    %v791 = vadd.f32 %v682, %v787
    %792 = vst [vmem:[#allocation8] sm:$0xff] %v790
    %793 = vst [vmem:[#allocation8 + $0x8] sm:$0xff] %v791
    // Predicated region
    $region34: #{tpu_custom_call.1} parent=1 // pred_check
      _
    $region35: #{tpu_custom_call.1} parent=1 // pred_check_branch
      %795 = sbr.rel (0) target = $region37
    $region36: #{tpu_custom_call.1} parent=1 // pred_region
      %s797 = ssub.s32 256, 256
      %798 = vsyncadd [#allocation4], %s797
      %s799 = sshll.u32 [#allocation8], 4
      %s800 = int_to_ptr.vmem [resolvable:$true] %s799
      %805 = dma.vmem_to_hbm [thread:$0]  %s800, 256, %s5, [#allocation4], 128, 128, 8
    $region37: #{tpu_custom_call.1} parent=1 // pred_fallthru
      _
    // Predicated region
    $region38: #{tpu_custom_call.1} parent=1 // pred_check
      _
    $region39: #{tpu_custom_call.1} parent=1 // pred_check_branch
      %807 = sbr.rel (0) target = $region41
    $region40: #{tpu_custom_call.1} parent=1 // pred_region
      %808 = dma.done [#allocation4], 256
    $region41: #{tpu_custom_call.1} parent=1 // pred_fallthru
      _
    %809 = vsyncpa [#allocation3], 1
    %810 = vsyncpa [#allocation6], 1
    %811 = vsyncpa [#allocation4], 1

</llo_original>
